<compile_context>
chip_gen: v7x
topology: tpu7x:2x2x1
jax: 0.10.0
libtpu: 0.0.40
codegen_flags: <defaults>
</compile_context>

<pallas_src>
import functools

import jax
import jax.numpy as jnp
from jax.experimental import pallas as pl
from jax.experimental.pallas import tpu as pltpu

_SUBLANE = 8  # vreg sublane count


def _round_up(n, m):
    return ((n + m - 1) // m) * m


def _cls_head_kernel(x_ref, w1_ref, b1_ref, w2_ref, b2_ref, o_ref):
    # Two MXU matmuls (f32 accumulation) + f32 bias adds + ReLU, all in VMEM.
    h = jnp.dot(x_ref[...], w1_ref[...], preferred_element_type=jnp.float32)
    h = jnp.maximum(h + b1_ref[...], 0.0)                     # (tb, D) f32
    # TODO(synk): Dropout(p=0.5) is identity in eval mode; a training-mode
    # mask (pltpu.prng_seed + prng_random_bits + 1/(1-p) scale) is not done.
    y = jnp.dot(h.astype(w2_ref.dtype), w2_ref[...],
                preferred_element_type=jnp.float32)
    o_ref[...] = (y + b2_ref[...]).astype(o_ref.dtype)        # (tb, C)


def prepare_params(w1, b1, w2, b2, *, use_bf16=False):
    """One-time parameter prep (call OUTSIDE the per-step path).

    Weights are kept (in_features, out_features); biases become (1, out) f32.
    With use_bf16=True the weights are cast once here so the forward pass
    does no per-call weight conversion.
    """
    wdt = jnp.bfloat16 if use_bf16 else jnp.float32
    return (w1.astype(wdt), b1.reshape(1, -1).astype(jnp.float32),
            w2.astype(wdt), b2.reshape(1, -1).astype(jnp.float32))


@functools.partial(jax.jit, static_argnames=("block_b", "use_bf16"))
def classifier_network_forward(x, w1, b1, w2, b2, *, block_b=512,
                               use_bf16=False):
    """x: (B, D); w1: (D, D); b1: (D,) or (1, D); w2: (D, C); b2: (C,) or (1, C).

    Weights are stored pre-transposed as (in_features, out_features).
    Returns (B, C) in x's original dtype.
    """
    B, D = x.shape
    C = w2.shape[1]
    out_dtype = x.dtype
    compute_dtype = jnp.bfloat16 if use_bf16 else x.dtype

    # No-ops when params were produced by prepare_params(...).
    xc = x.astype(compute_dtype)
    w1c = w1.astype(compute_dtype)
    w2c = w2.astype(compute_dtype)
    b1r = b1.reshape(1, D).astype(jnp.float32)
    b2r = b2.reshape(1, C).astype(jnp.float32)

    # Batch tile: no padding of B; Pallas handles the ragged last block.
    if B > block_b:
        tb = block_b
    else:
        # Split into (up to) two tiles so v7x's two TensorCores both get work;
        # tiny batches collapse to a single sublane-aligned tile.
        half = _round_up(pl.cdiv(B, 2), _SUBLANE)
        tb = max(_SUBLANE, min(half, _round_up(B, _SUBLANE)))
    grid = (pl.cdiv(B, tb),)

    x_item = jnp.dtype(compute_dtype).itemsize
    o_item = jnp.dtype(out_dtype).itemsize

    # VMEM plan: double-buffered x/out blocks + (double-buffered) resident
    # weights and biases, with headroom.  Floor at the 32 MiB scoped default,
    # cap at v7x's 64 MiB physical VMEM.
    w_bytes = (D * D + D * C) * x_item + (D + C) * 4
    vmem_need = 2 * tb * (D * x_item + C * o_item) + 2 * w_bytes + (2 << 20)
    vmem_limit = int(min(max(vmem_need, 32 << 20), 64 << 20))

    # Cost estimate from true (unpadded) shapes.
    flops = 2 * B * D * (D + C) + B * D
    bytes_accessed = (B * D * x_item + B * C * o_item
                      + (D * D + D * C) * x_item + (D + C) * 4)

    out = pl.pallas_call(
        _cls_head_kernel,
        out_shape=jax.ShapeDtypeStruct((B, C), out_dtype),
        grid=grid,
        in_specs=[
            pl.BlockSpec((tb, D), lambda i: (i, 0)),   # x: pipelined over batch
            pl.BlockSpec((D, D), lambda i: (0, 0)),    # w1: resident
            pl.BlockSpec((1, D), lambda i: (0, 0)),    # b1: resident
            pl.BlockSpec((D, C), lambda i: (0, 0)),    # w2: resident
            pl.BlockSpec((1, C), lambda i: (0, 0)),    # b2: resident
        ],
        out_specs=pl.BlockSpec((tb, C), lambda i: (i, 0)),
        compiler_params=pltpu.CompilerParams(
            dimension_semantics=("parallel",),
            vmem_limit_bytes=vmem_limit,
        ),
        cost_estimate=pl.CostEstimate(
            flops=flops, transcendentals=0, bytes_accessed=bytes_accessed),
    )(xc, w1c, b1r, w2c, b2r)

    return out


def init_params(key, num_classes, patches, dtype=jnp.float32):
    """Mirrors trunc_normal_(std=0.02) weights and zero biases.
    Weights returned as (in, out), i.e. already transposed vs nn.Linear."""
    D = num_classes * patches
    k1, k2 = jax.random.split(key)
    w1 = (jax.random.truncated_normal(k1, -2.0, 2.0, (D, D)) * 0.02).astype(dtype)
    b1 = jnp.zeros((D,), dtype)
    w2 = (jax.random.truncated_normal(k2, -2.0, 2.0, (D, num_classes)) * 0.02).astype(dtype)
    b2 = jnp.zeros((num_classes,), dtype)
    return w1, b1, w2, b2


if __name__ == "__main__":
    num_classes = 8
    patches = 4
    batch = 2
    D = num_classes * patches  # 32

    key = jax.random.PRNGKey(0)
    kx, kp = jax.random.split(key)
    x = jax.random.normal(kx, (batch, D), dtype=jnp.float32)
    w1, b1, w2, b2 = init_params(kp, num_classes, patches)

    # f32 path: exact parity with the PyTorch (eval-mode) module.
    p32 = prepare_params(w1, b1, w2, b2, use_bf16=False)
    out = jax.block_until_ready(classifier_network_forward(x, *p32))
    ref = jnp.maximum(x @ w1 + b1, 0.0) @ w2 + b2
    assert out.shape == (batch, num_classes)
    assert jnp.allclose(out, ref, atol=1e-5, rtol=1e-5)

    # Non-multiple batch exercises the ragged last tile and the 2-step grid.
    xb = jax.random.normal(jax.random.PRNGKey(1), (300, D), dtype=jnp.float32)
    outb = jax.block_until_ready(classifier_network_forward(xb, *p32))
    refb = jnp.maximum(xb @ w1 + b1, 0.0) @ w2 + b2
    assert outb.shape == (300, num_classes)
    assert jnp.allclose(outb, refb, atol=1e-5, rtol=1e-5)

    # bf16-MXU path (v6e/v7x lever): looser tolerance vs the f32 reference.
    pbf = prepare_params(w1, b1, w2, b2, use_bf16=True)
    outbf = jax.block_until_ready(
        classifier_network_forward(xb, *pbf, use_bf16=True))
    assert outbf.shape == (300, num_classes)
    assert jnp.allclose(outbf, refb, atol=2e-2, rtol=2e-2)

    print("KERNEL_OK")
</pallas_src>

<mosaic_0001>
module attributes {stable_mosaic.version = 11 : i64} {
  func.func @_cls_head_kernel(%arg0: i32, %arg1: memref<8x32xf32, #tpu.memory_space<vmem>>, %arg2: memref<32x32xf32, #tpu.memory_space<vmem>>, %arg3: memref<1x32xf32, #tpu.memory_space<vmem>>, %arg4: memref<32x8xf32, #tpu.memory_space<vmem>>, %arg5: memref<1x8xf32, #tpu.memory_space<vmem>>, %arg6: memref<8x8xf32, #tpu.memory_space<vmem>>) attributes {dimension_semantics = [#tpu.dimension_semantics<parallel>], iteration_bounds = array<i64: 1>, scalar_prefetch = 0 : i64, scratch_operands = 0 : i64, tpu.core_type = #tpu.core_type<tc>, window_params = [{transform_indices = @transform_0, window_bounds = array<i64: 8, 32>}, {pipeline_mode = #tpu.pipeline_mode<synchronous>, transform_indices = @transform_1, window_bounds = array<i64: 32, 32>}, {pipeline_mode = #tpu.pipeline_mode<synchronous>, transform_indices = @transform_2, window_bounds = array<i64: 1, 32>}, {pipeline_mode = #tpu.pipeline_mode<synchronous>, transform_indices = @transform_3, window_bounds = array<i64: 32, 8>}, {pipeline_mode = #tpu.pipeline_mode<synchronous>, transform_indices = @transform_4, window_bounds = array<i64: 1, 8>}, {transform_indices = @transform_5, window_bounds = array<i64: 8, 8>}]} {
    %c0 = arith.constant 0 : index
    %c0_0 = arith.constant 0 : index
    %0 = vector.load %arg1[%c0, %c0_0] : memref<8x32xf32, #tpu.memory_space<vmem>>, vector<8x32xf32>
    %c0_1 = arith.constant 0 : index
    %c0_2 = arith.constant 0 : index
    %1 = vector.load %arg2[%c0_1, %c0_2] : memref<32x32xf32, #tpu.memory_space<vmem>>, vector<32x32xf32>
    %cst = arith.constant dense<0.000000e+00> : vector<8x32xf32>
    %2 = tpu.matmul %0, %1, %cst {dimension_numbers = #tpu.dot_dimension_numbers<[1], [0], [0], [1], [0, 0, 1, 1], [], []>} : vector<8x32xf32>, vector<32x32xf32>, vector<8x32xf32> -> vector<8x32xf32>
    %c0_3 = arith.constant 0 : index
    %c0_4 = arith.constant 0 : index
    %3 = vector.load %arg3[%c0_3, %c0_4] : memref<1x32xf32, #tpu.memory_space<vmem>>, vector<1x32xf32>
    %4 = vector.broadcast %3 : vector<1x32xf32> to vector<8x32xf32>
    %5 = arith.addf %2, %4 : vector<8x32xf32>
    %cst_5 = arith.constant 0.000000e+00 : f32
    %6 = vector.broadcast %cst_5 : f32 to vector<8x32xf32>
    %7 = arith.maximumf %5, %6 : vector<8x32xf32>
    %c0_6 = arith.constant 0 : index
    %c0_7 = arith.constant 0 : index
    %8 = vector.load %arg4[%c0_6, %c0_7] : memref<32x8xf32, #tpu.memory_space<vmem>>, vector<32x8xf32>
    %cst_8 = arith.constant dense<0.000000e+00> : vector<8x8xf32>
    %9 = tpu.matmul %7, %8, %cst_8 {dimension_numbers = #tpu.dot_dimension_numbers<[1], [0], [0], [1], [0, 0, 1, 1], [], []>} : vector<8x32xf32>, vector<32x8xf32>, vector<8x8xf32> -> vector<8x8xf32>
    %c0_9 = arith.constant 0 : index
    %c0_10 = arith.constant 0 : index
    %10 = vector.load %arg5[%c0_9, %c0_10] : memref<1x8xf32, #tpu.memory_space<vmem>>, vector<1x8xf32>
    %11 = vector.broadcast %10 : vector<1x8xf32> to vector<8x8xf32>
    %12 = arith.addf %9, %11 : vector<8x8xf32>
    %c0_11 = arith.constant 0 : index
    %c0_12 = arith.constant 0 : index
    %13 = vector.load %arg6[%c0_11, %c0_12] : memref<8x8xf32, #tpu.memory_space<vmem>>, vector<8x8xf32>
    tpu.vector_store %arg6[%c0_11, %c0_12], %12 {strides = array<i32>} : memref<8x8xf32, #tpu.memory_space<vmem>>, vector<8x8xf32>,
    return
  }
  func.func @transform_0(%arg0: i32) -> (i32, i32) {
    %c0_i32 = arith.constant 0 : i32
    %c0_i32_0 = arith.constant 0 : i32
    return %arg0, %c0_i32 : i32, i32
  }
  func.func @transform_1(%arg0: i32) -> (i32, i32) {
    %c0_i32 = arith.constant 0 : i32
    %c0_i32_0 = arith.constant 0 : i32
    %c0_i32_1 = arith.constant 0 : i32
    return %c0_i32, %c0_i32_0 : i32, i32
  }
  func.func @transform_2(%arg0: i32) -> (i32, i32) {
    %c0_i32 = arith.constant 0 : i32
    %c0_i32_0 = arith.constant 0 : i32
    %c0_i32_1 = arith.constant 0 : i32
    return %c0_i32, %c0_i32_0 : i32, i32
  }
  func.func @transform_3(%arg0: i32) -> (i32, i32) {
    %c0_i32 = arith.constant 0 : i32
    %c0_i32_0 = arith.constant 0 : i32
    %c0_i32_1 = arith.constant 0 : i32
    return %c0_i32, %c0_i32_0 : i32, i32
  }
  func.func @transform_4(%arg0: i32) -> (i32, i32) {
    %c0_i32 = arith.constant 0 : i32
    %c0_i32_0 = arith.constant 0 : i32
    %c0_i32_1 = arith.constant 0 : i32
    return %c0_i32, %c0_i32_0 : i32, i32
  }
  func.func @transform_5(%arg0: i32) -> (i32, i32) {
    %c0_i32 = arith.constant 0 : i32
    %c0_i32_0 = arith.constant 0 : i32
    return %arg0, %c0_i32 : i32, i32
  }
}

</mosaic_0001>

<llo_original>
// kernel: classifier_network_forward.1
$region0: #{classifier_network_forward.1}
  #allocation0 [shape = 'u32[]', space=smem, size = 0x4, offset = 0x4, fixed_abs, tag = 'smem constant byte address 0x4 - core index']
  #allocation1 [shape = 'u32[144,128]{1,0:T(1,128)}', space=vmem, size = 0x12000, scoped, tag = 'internal scratch']
  %s0 = inlined_call_operand.vmem [shape: f32[2,32], index: 0, kind: input, shape index: {}]
  %s1 = inlined_call_operand.vmem [shape: f32[32,32], index: 1, kind: input, shape index: {}]
  %s2 = inlined_call_operand.vmem [shape: f32[1,32], index: 2, kind: input, shape index: {}]
  %s3 = inlined_call_operand.vmem [shape: f32[32,8], index: 3, kind: input, shape index: {}]
  %s4 = inlined_call_operand.vmem [shape: f32[1,8], index: 4, kind: input, shape index: {}]
  %s5 = inlined_call_operand.hbm [shape: f32[2,8], index: 5, kind: output, shape index: {}]
  %s6 = sld [smem:[#allocation0]]
  $region30: #{classifier_network_forward.1} parent=0
    _
  %s8 = ssub.s32 1, %s6
  %s9 = scalar_select 0, %s8, %s6
  $region1: #{classifier_network_forward.1} parent=0
    #allocation2 [shape = 'u8[4096]{0}', space=vmem, size = 0x1000, scoped, tag = 'output window, operand 0, single buffered']
    #allocation3 [shape = 's32[1]{0}', space=sflag, size = 0x4, scoped, tag = 'scoped memory for classifier_network_forward.1']
    %10 = vsyncpa [#allocation3], 0
    // Predicated region
    $region2: #{classifier_network_forward.1} parent=1 // pred_check
      _
    $region3: #{classifier_network_forward.1} parent=1 // pred_check_branch
      %12 = sbr.rel (0) target = $region5
    $region4: #{classifier_network_forward.1} parent=1 // pred_region
      _
    $region5: #{classifier_network_forward.1} parent=1 // pred_fallthru
      _
    // Predicated region
    $region6: #{classifier_network_forward.1} parent=1 // pred_check
      _
    $region7: #{classifier_network_forward.1} parent=1 // pred_check_branch
      %14 = sbr.rel (0) target = $region9
    $region8: #{classifier_network_forward.1} parent=1 // pred_region
      _
    $region9: #{classifier_network_forward.1} parent=1 // pred_fallthru
      _
    // Predicated region
    $region10: #{classifier_network_forward.1} parent=1 // pred_check
      _
    $region11: #{classifier_network_forward.1} parent=1 // pred_check_branch
      %16 = sbr.rel (0) target = $region13
    $region12: #{classifier_network_forward.1} parent=1 // pred_region
      _
    $region13: #{classifier_network_forward.1} parent=1 // pred_fallthru
      _
    // Predicated region
    $region14: #{classifier_network_forward.1} parent=1 // pred_check
      _
    $region15: #{classifier_network_forward.1} parent=1 // pred_check_branch
      %18 = sbr.rel (0) target = $region17
    $region16: #{classifier_network_forward.1} parent=1 // pred_region
      _
    $region17: #{classifier_network_forward.1} parent=1 // pred_fallthru
      _
    // Predicated region
    $region18: #{classifier_network_forward.1} parent=1 // pred_check
      _
    $region19: #{classifier_network_forward.1} parent=1 // pred_check_branch
      %20 = sbr.rel (0) target = $region21
    $region20: #{classifier_network_forward.1} parent=1 // pred_region
      _
    $region21: #{classifier_network_forward.1} parent=1 // pred_fallthru
      _
    %v21 = vld [vmem:[%s0] sm:$0xff]
    %v22 = vld [vmem:[%s1] sm:$0xff]
    %v23 = vld [vmem:[%s1 + $0x8] sm:$0xff]
    %v24 = vld [vmem:[%s1 + $0x10] sm:$0xff]
    %v25 = vld [vmem:[%s1 + $0x18] sm:$0xff]
    %v26 = vld [vmem:[%s2] sm:$0x1]
    %v28 = vlaneseq
    %v29 = vshrl.u32 %v28, 7
    %v30 = vsub.s32 0, %v29
    %v31 = vrot.slane %v26, %v30
    %vm33 = vcmask 261120
    %v35 = vsel %vm33, %v21, 0
    %37 = vmatprep.subr.mxu0 0.0
    %38 = vmatpush1.msra.mxu0 %v22
    %39 = vmatprep.subr.mxu0 0.0
    %40 = vmatpush1.msra.mxu0 %v23
    %41 = vmatprep.subr.mxu0 0.0
    %42 = vmatpush1.msra.mxu0 %v24
    %43 = vmatprep.subr.mxu0 0.0
    %44 = vmatpush1.msra.mxu0 %v25
    %45 = vmatprep.subr.mxu0 0.0
    %46 = vmatpush1.msra.mxu0 0.0
    %47 = vmatprep.subr.mxu0 0.0
    %48 = vmatpush1.msra.mxu0 0.0
    %49 = vmatprep.subr.mxu0 0.0
    %50 = vmatpush1.msra.mxu0 0.0
    %51 = vmatprep.subr.mxu0 0.0
    %52 = vmatpush1.msra.mxu0 0.0
    %53 = vmatprep.subr.mxu0 0.0
    %54 = vmatpush1.msra.mxu0 0.0
    %55 = vmatprep.subr.mxu0 0.0
    %56 = vmatpush1.msra.mxu0 0.0
    %57 = vmatprep.subr.mxu0 0.0
    %58 = vmatpush1.msra.mxu0 0.0
    %59 = vmatprep.subr.mxu0 0.0
    %60 = vmatpush1.msra.mxu0 0.0
    %61 = vmatprep.subr.mxu0 0.0
    %62 = vmatpush1.msra.mxu0 0.0
    %63 = vmatprep.subr.mxu0 0.0
    %64 = vmatpush1.msra.mxu0 0.0
    %65 = vmatprep.subr.mxu0 0.0
    %66 = vmatpush1.msra.mxu0 0.0
    %67 = vmatprep.subr.mxu0 0.0
    %68 = vmatpush1.msra.mxu0 0.0
    %69 = vmatprep.subr.mxu0 0.0
    %70 = vmatpush1.msra.mxu0 0.0
    %71 = vmatprep.subr.mxu0 0.0
    %72 = vmatpush1.msra.mxu0 0.0
    %73 = vmatprep.subr.mxu0 0.0
    %74 = vmatpush1.msra.mxu0 0.0
    %75 = vmatprep.subr.mxu0 0.0
    %76 = vmatpush1.msra.mxu0 0.0
    %77 = vmatprep.subr.mxu0 0.0
    %78 = vmatpush1.msra.mxu0 0.0
    %79 = vmatprep.subr.mxu0 0.0
    %80 = vmatpush1.msra.mxu0 0.0
    %81 = vmatprep.subr.mxu0 0.0
    %82 = vmatpush1.msra.mxu0 0.0
    %83 = vmatprep.subr.mxu0 0.0
    %84 = vmatpush1.msra.mxu0 0.0
    %85 = vmatprep.subr.mxu0 0.0
    %86 = vmatpush1.msra.mxu0 0.0
    %87 = vmatprep.subr.mxu0 0.0
    %88 = vmatpush1.msra.mxu0 0.0
    %89 = vmatprep.subr.mxu0 0.0
    %90 = vmatpush1.msra.mxu0 0.0
    %91 = vmatprep.subr.mxu0 0.0
    %92 = vmatpush1.msra.mxu0 0.0
    %93 = vmatprep.subr.mxu0 0.0
    %94 = vmatpush1.msra.mxu0 0.0
    %95 = vmatprep.subr.mxu0 0.0
    %96 = vmatpush1.msra.mxu0 0.0
    %97 = vmatprep.subr.mxu0 0.0
    %98 = vmatpush1.msra.mxu0 0.0
    %99 = vmatprep.subr.mxu0 0.0
    %100 = vmatpush1.msra.mxu0 0.0
    %101 = vmatprep.mubr.f32.mxu0 0.0
    %102 = vmatmul.mubr.f32.gmra.mrb[0].mxu0 %v35
    %v103 = vpop.f32.mrb[0].mxu0
    %v104 = vadd.f32 %v31, %v103
    %v105 = vpop.f32.mrb[0].mxu0
    %106 = vdwg.mxu0
    %v107 = vmax.f32 %v104, 0.0
    %v108 = vld [vmem:[%s3] sm:$0xff]
    %v109 = vld [vmem:[%s3 + $0x8] sm:$0xff]
    %v110 = vld [vmem:[%s3 + $0x10] sm:$0xff]
    %v111 = vld [vmem:[%s3 + $0x18] sm:$0xff]
    %v112 = vld [vmem:[%s4] sm:$0x1]
    %v114 = vlaneseq
    %v115 = vshrl.u32 %v114, 7
    %v116 = vsub.s32 0, %v115
    %v117 = vrot.slane %v112, %v116
    %v120 = vsel %vm33, %v107, 0
    %122 = vmatprep.subr.mxu0 0.0
    %123 = vmatpush1.msra.mxu0 %v108
    %124 = vmatprep.subr.mxu0 0.0
    %125 = vmatpush1.msra.mxu0 %v109
    %126 = vmatprep.subr.mxu0 0.0
    %127 = vmatpush1.msra.mxu0 %v110
    %128 = vmatprep.subr.mxu0 0.0
    %129 = vmatpush1.msra.mxu0 %v111
    %130 = vmatprep.subr.mxu0 0.0
    %131 = vmatpush1.msra.mxu0 0.0
    %132 = vmatprep.subr.mxu0 0.0
    %133 = vmatpush1.msra.mxu0 0.0
    %134 = vmatprep.subr.mxu0 0.0
    %135 = vmatpush1.msra.mxu0 0.0
    %136 = vmatprep.subr.mxu0 0.0
    %137 = vmatpush1.msra.mxu0 0.0
    %138 = vmatprep.subr.mxu0 0.0
    %139 = vmatpush1.msra.mxu0 0.0
    %140 = vmatprep.subr.mxu0 0.0
    %141 = vmatpush1.msra.mxu0 0.0
    %142 = vmatprep.subr.mxu0 0.0
    %143 = vmatpush1.msra.mxu0 0.0
    %144 = vmatprep.subr.mxu0 0.0
    %145 = vmatpush1.msra.mxu0 0.0
    %146 = vmatprep.subr.mxu0 0.0
    %147 = vmatpush1.msra.mxu0 0.0
    %148 = vmatprep.subr.mxu0 0.0
    %149 = vmatpush1.msra.mxu0 0.0
    %150 = vmatprep.subr.mxu0 0.0
    %151 = vmatpush1.msra.mxu0 0.0
    %152 = vmatprep.subr.mxu0 0.0
    %153 = vmatpush1.msra.mxu0 0.0
    %154 = vmatprep.subr.mxu0 0.0
    %155 = vmatpush1.msra.mxu0 0.0
    %156 = vmatprep.subr.mxu0 0.0
    %157 = vmatpush1.msra.mxu0 0.0
    %158 = vmatprep.subr.mxu0 0.0
    %159 = vmatpush1.msra.mxu0 0.0
    %160 = vmatprep.subr.mxu0 0.0
    %161 = vmatpush1.msra.mxu0 0.0
    %162 = vmatprep.subr.mxu0 0.0
    %163 = vmatpush1.msra.mxu0 0.0
    %164 = vmatprep.subr.mxu0 0.0
    %165 = vmatpush1.msra.mxu0 0.0
    %166 = vmatprep.subr.mxu0 0.0
    %167 = vmatpush1.msra.mxu0 0.0
    %168 = vmatprep.subr.mxu0 0.0
    %169 = vmatpush1.msra.mxu0 0.0
    %170 = vmatprep.subr.mxu0 0.0
    %171 = vmatpush1.msra.mxu0 0.0
    %172 = vmatprep.subr.mxu0 0.0
    %173 = vmatpush1.msra.mxu0 0.0
    %174 = vmatprep.subr.mxu0 0.0
    %175 = vmatpush1.msra.mxu0 0.0
    %176 = vmatprep.subr.mxu0 0.0
    %177 = vmatpush1.msra.mxu0 0.0
    %178 = vmatprep.subr.mxu0 0.0
    %179 = vmatpush1.msra.mxu0 0.0
    %180 = vmatprep.subr.mxu0 0.0
    %181 = vmatpush1.msra.mxu0 0.0
    %182 = vmatprep.subr.mxu0 0.0
    %183 = vmatpush1.msra.mxu0 0.0
    %184 = vmatprep.subr.mxu0 0.0
    %185 = vmatpush1.msra.mxu0 0.0
    %186 = vmatprep.mubr.f32.mxu0 0.0
    %187 = vmatmul.mubr.f32.gmra.mrb[0].mxu0 %v120
    %v188 = vpop.f32.mrb[0].mxu0
    %v189 = vadd.f32 %v117, %v188
    %v190 = vpop.f32.mrb[0].mxu0
    %191 = vdwg.mxu0
    %vm192 = vcmask 64512
    %193 = vst.msk [vmem:[#allocation2] sm:$0xff] %vm192, %v189
    // Predicated region
    $region22: #{classifier_network_forward.1} parent=1 // pred_check
      _
    $region23: #{classifier_network_forward.1} parent=1 // pred_check_branch
      %195 = sbr.rel (0) target = $region25
    $region24: #{classifier_network_forward.1} parent=1 // pred_region
      %s197 = ssub.s32 128, 32
      %198 = vsyncadd [#allocation3], %s197
      %s199 = sshll.u32 [#allocation2], 4
      %s200 = int_to_ptr.vmem [resolvable:$true] %s199
      %205 = dma.vmem_to_hbm [thread:$0]  %s200, 32, %s5, [#allocation3], 32, 32, 2
    $region25: #{classifier_network_forward.1} parent=1 // pred_fallthru
      _
    // Predicated region
    $region26: #{classifier_network_forward.1} parent=1 // pred_check
      _
    $region27: #{classifier_network_forward.1} parent=1 // pred_check_branch
      %207 = sbr.rel (0) target = $region29
    $region28: #{classifier_network_forward.1} parent=1 // pred_region
      %208 = dma.done [#allocation3], 128
    $region29: #{classifier_network_forward.1} parent=1 // pred_fallthru
      _
    %209 = vsyncpa [#allocation3], 1

</llo_original>
